<compile_context>
chip_gen: v7x
topology: tpu7x:2x2x1
jax: 0.10.0
libtpu: 0.0.40
codegen_flags: <defaults>
</compile_context>

<pallas_src>
import functools
import math
import warnings

import jax
import jax.numpy as jnp
from jax.experimental import pallas as pl
from jax.experimental.pallas import tpu as pltpu

# Donation is best-effort; if XLA can't reuse the buffer it falls back to a
# copy and warns — keep the script output clean either way.
warnings.filterwarnings("ignore", message="Some donated buffers were not usable")

_MIB = 1024 * 1024

# Per-generation pipeline budgets.
#   vmem_budget : VMEM allowed for live pipeline buffers (double-buffered
#                 x/out in the model dtype + pe in f32).
#   vmem_limit  : explicit vmem_limit_bytes for the kernel (None -> default).
#   min_steps   : minimum grid steps so megacore can split work (v7x: 2 TCs).
_GEN_PARAMS = {
    "v7": dict(vmem_budget=44 * _MIB, vmem_limit=52 * _MIB, min_steps=4),  # 64 MiB phys VMEM
    "v6": dict(vmem_budget=28 * _MIB, vmem_limit=40 * _MIB, min_steps=1),  # 128 MiB phys VMEM
    "v5": dict(vmem_budget=12 * _MIB, vmem_limit=None, min_steps=1),       # 16 MiB scoped default
    None: dict(vmem_budget=12 * _MIB, vmem_limit=None, min_steps=1),
}

_MIN_PALLAS_BYTES = 256 * 1024  # below this, fused XLA add beats kernel launch overhead


def _tpu_generation():
    try:
        kind = jax.devices()[0].device_kind.lower()
    except Exception:
        return None
    for tag in ("v7", "v6", "v5"):
        if tag in kind:
            return tag
    return None


_TPU_GEN = _tpu_generation()


def _build_pe(d_model: int, max_len: int, dtype=jnp.float32) -> jnp.ndarray:
    """Sinusoidal table, same math as the PyTorch __init__ (odd d_model fixed)."""
    position = jnp.arange(0, max_len, dtype=jnp.float32)[:, None]            # (max_len, 1)
    div_term = jnp.exp(
        jnp.arange(0, d_model, 2, dtype=jnp.float32) * (-math.log(10000.0) / d_model)
    )                                                                         # (ceil(d/2),)
    angles = position * div_term                                              # (max_len, ceil(d/2))
    pe = jnp.zeros((max_len, d_model), dtype=jnp.float32)
    pe = pe.at[:, 0::2].set(jnp.sin(angles))
    pe = pe.at[:, 1::2].set(jnp.cos(angles[:, : d_model // 2]))
    return pe.astype(dtype)                                                   # (max_len, d_model)


def _add_pe_kernel(x_ref, pe_ref, o_ref):
    # x_ref / o_ref : (tile_r, C) in the model dtype (batch dim squeezed away).
    # pe_ref        : (tile_r, C) float32 (when resident, tile_r == R).
    # f32 add on the VPU; the casts are free under the DMA, one downcast at end.
    o_ref[...] = (x_ref[...].astype(jnp.float32) + pe_ref[...]).astype(o_ref.dtype)


def _pick_tile_rows(num_rows, num_cols, x_itemsize, vmem_budget, align, min_steps, batch):
    """Row tile for the pe-tiled pipeline: a multiple of `align` sublanes."""
    # One pipeline step holds double-buffered x + out (model dtype) and pe (f32).
    per_row = num_cols * 2 * (2 * x_itemsize + 4)
    max_rows = max(align, int(vmem_budget) // per_row)
    tile = min(num_rows, max(align, (max_rows // align) * align))
    if min_steps > 1:
        # Ensure enough grid steps to feed both v7x TensorCores.
        while pl.cdiv(num_rows, tile) * batch < min_steps and tile > align:
            new_tile = max(align, ((tile // 2) // align) * align)
            if new_tile == tile:
                break
            tile = new_tile
    return int(tile)


def _tiled_batched_add(x3: jnp.ndarray, pe2: jnp.ndarray, *, alias: bool) -> jnp.ndarray:
    """x3: (B, R, C) in model dtype; pe2: (R, C) float32. Returns x3 + pe2[None]."""
    B, R, C = x3.shape
    params = _GEN_PARAMS.get(_TPU_GEN, _GEN_PARAMS[None])
    budget, vmem_limit, min_steps = (
        params["vmem_budget"], params["vmem_limit"], params["min_steps"])
    x_item = jnp.dtype(x3.dtype).itemsize
    align = max(8, 32 // x_item)            # sublane pack: 8 f32 / 16 bf16 / 32 int8

    # If the whole per-batch plane fits the budget (and we don't need to split
    # rows to feed both v7x TensorCores), use one row tile and keep pe as a
    # single resident block: DMA'd exactly once for the whole call.
    full_cost = 2 * (2 * R * C * x_item) + R * C * 4
    need_row_split = (min_steps > 1) and (B < min_steps) and (R >= 2 * align)
    if full_cost <= budget and not need_row_split:
        tile_r = R
        pe_spec = pl.BlockSpec((R, C), lambda r, b: (0, 0))
    else:
        tile_r = _pick_tile_rows(R, C, x_item, budget, align, min_steps, B)
        # pe block index repeats across the inner batch axis -> Pallas skips
        # re-DMA of pe across the batch (pe HBM traffic ~ R*C, not B*R*C).
        pe_spec = pl.BlockSpec((tile_r, C), lambda r, b: (r, 0))
    num_r = pl.cdiv(R, tile_r)

    grid_spec = pltpu.PrefetchScalarGridSpec(
        num_scalar_prefetch=0,
        grid=(num_r, B),                    # batch innermost
        in_specs=[
            pl.BlockSpec((pl.Squeezed(), tile_r, C), lambda r, b: (b, r, 0)),  # x
            pe_spec,                                                           # pe (f32)
        ],
        out_specs=pl.BlockSpec((pl.Squeezed(), tile_r, C), lambda r, b: (b, r, 0)),
    )

    cp = dict(dimension_semantics=("parallel", "parallel"))
    if vmem_limit is not None:
        cp["vmem_limit_bytes"] = int(vmem_limit)

    call_kwargs = {}
    if alias:
        # Only alias when the caller donated x; aliasing a live buffer would
        # make XLA insert a defensive full copy of x (see perf review).
        call_kwargs["input_output_aliases"] = {0: 0}

    return pl.pallas_call(
        _add_pe_kernel,
        out_shape=jax.ShapeDtypeStruct((B, R, C), x3.dtype),
        grid_spec=grid_spec,
        compiler_params=pltpu.CompilerParams(**cp),
        **call_kwargs,
    )(x3, pe2)


def _positional_add(x: jnp.ndarray, pe: jnp.ndarray, *, alias: bool) -> jnp.ndarray:
    B, S, D = x.shape
    # Static prefix slice of the table, kept in f32 (the dtype cast now lives
    # inside the kernel).  TODO(synk): in a real model keep pe pre-sliced and
    # fuse this whole add into the adjacent op (embedding scale / dropout).
    pe_slice = pe[:S, :].astype(jnp.float32)

    if (S * D) % 128 == 0:
        # Lane-dense view: last dim exactly 128 -> unmasked full-lane stores
        # even when d_model itself is small / not a multiple of 128.
        rows = (S * D) // 128
        out = _tiled_batched_add(
            x.reshape(B, rows, 128), pe_slice.reshape(rows, 128), alias=alias)
        return out.reshape(B, S, D)

    # Fallback: tile over the sequence dim with the full feature dim.
    # TODO(synk): pad D to a multiple of 128 for large B*S with awkward small D.
    return _tiled_batched_add(x, pe_slice, alias=alias)


_forward_pallas = jax.jit(functools.partial(_positional_add, alias=False))
_forward_pallas_donated = jax.jit(
    functools.partial(_positional_add, alias=True), donate_argnums=(0,))


@jax.jit
def _forward_xla(x: jnp.ndarray, pe: jnp.ndarray) -> jnp.ndarray:
    S = x.shape[1]
    return (x.astype(jnp.float32) + pe[None, :S, :].astype(jnp.float32)).astype(x.dtype)


def positional_encoding_forward(x: jnp.ndarray, pe: jnp.ndarray, *,
                                donate: bool = False,
                                min_pallas_bytes: int = _MIN_PALLAS_BYTES) -> jnp.ndarray:
    """x: [B, S, D]; pe: [max_len, D]. Returns x + pe[:S] broadcast over batch.

    donate=True makes the update truly in place (x's HBM buffer is reused for
    the output); the caller must not use x afterwards.
    """
    if x.ndim != 3:
        raise ValueError(f"expected x of rank 3 [B, S, D], got shape {x.shape}")
    if x.shape[1] > pe.shape[0]:
        raise ValueError(
            f"sequence length {x.shape[1]} exceeds positional table max_len {pe.shape[0]}")
    if x.shape[2] != pe.shape[1]:
        raise ValueError(f"d_model mismatch: x has {x.shape[2]}, pe has {pe.shape[1]}")

    if x.size * jnp.dtype(x.dtype).itemsize < min_pallas_bytes:
        # Tiny input: pallas_call fixed overhead dominates; fused XLA add wins.
        return _forward_xla(x, pe)
    if donate:
        return _forward_pallas_donated(x, pe)
    return _forward_pallas(x, pe)


if __name__ == "__main__":
    key = jax.random.PRNGKey(0)
    MAX_LEN = 64

    # --- Test 1: f32, S*D multiple of 128 -> lane-dense (rows, 128) path ----
    B, S, D = 2, 8, 32
    x = jax.random.normal(key, (B, S, D), dtype=jnp.float32)
    pe = _build_pe(D, MAX_LEN)
    ref = x + pe[None, :S, :]                                # reference BEFORE kernel
    out = jax.block_until_ready(positional_encoding_forward(x, pe, min_pallas_bytes=0))
    assert out.shape == (B, S, D) and out.dtype == jnp.float32
    assert jnp.allclose(out, ref, atol=1e-6), "f32 lane-dense path mismatch"

    # --- Test 2: bf16, S*D NOT multiple of 128 -> (S, D) fallback, f32 add --
    B2, S2, D2 = 2, 5, 24
    x2 = jax.random.normal(jax.random.PRNGKey(0), (B2, S2, D2), dtype=jnp.bfloat16)
    pe2 = _build_pe(D2, MAX_LEN)
    ref2 = (x2.astype(jnp.float32) + pe2[None, :S2, :]).astype(jnp.bfloat16)
    out2 = jax.block_until_ready(positional_encoding_forward(x2, pe2, min_pallas_bytes=0))
    assert out2.shape == (B2, S2, D2) and out2.dtype == jnp.bfloat16
    assert jnp.allclose(out2.astype(jnp.float32), ref2.astype(jnp.float32),
                        atol=1e-2), "bf16 fallback path mismatch"

    # --- Test 3: donated (true in-place) path --------------------------------
    x3 = jax.random.normal(jax.random.PRNGKey(1), (B, S, D), dtype=jnp.float32)
    ref3 = x3 + pe[None, :S, :]
    out3 = jax.block_until_ready(
        positional_encoding_forward(x3, pe, donate=True, min_pallas_bytes=0))
    del x3  # donated: caller must not reuse it
    assert jnp.allclose(out3, ref3, atol=1e-6), "donated path mismatch"

    # --- Test 4: tiny-input escape hatch (fused XLA add, no pallas_call) ----
    out4 = jax.block_until_ready(positional_encoding_forward(x, pe))
    assert jnp.allclose(out4, ref, atol=1e-6), "XLA escape-hatch mismatch"

    print("KERNEL_OK")
</pallas_src>

<mosaic_0001>
module attributes {stable_mosaic.version = 11 : i64} {
  func.func @_add_pe_kernel(%arg0: i32, %arg1: i32, %arg2: memref<1x2x128xf32, #tpu.memory_space<vmem>>, %arg3: memref<2x128xf32, #tpu.memory_space<vmem>>, %arg4: memref<1x2x128xf32, #tpu.memory_space<vmem>>) attributes {dimension_semantics = [#tpu.dimension_semantics<parallel>, #tpu.dimension_semantics<parallel>], iteration_bounds = array<i64: 1, 2>, scalar_prefetch = 0 : i64, scratch_operands = 0 : i64, tpu.core_type = #tpu.core_type<tc>, window_params = [{transform_indices = @transform_0, window_bounds = array<i64: 1, 2, 128>}, {pipeline_mode = #tpu.pipeline_mode<synchronous>, transform_indices = @transform_1, window_bounds = array<i64: 2, 128>}, {transform_indices = @transform_2, window_bounds = array<i64: 1, 2, 128>}]} {
    %c0 = arith.constant 0 : index
    %c0_0 = arith.constant 0 : index
    %c0_1 = arith.constant 0 : index
    %0 = vector.load %arg2[%c0, %c0_0, %c0_1] : memref<1x2x128xf32, #tpu.memory_space<vmem>>, vector<1x2x128xf32>
    %1 = vector.shape_cast %0 : vector<1x2x128xf32> to vector<2x128xf32>
    %c0_2 = arith.constant 0 : index
    %c0_3 = arith.constant 0 : index
    %2 = vector.load %arg3[%c0_2, %c0_3] : memref<2x128xf32, #tpu.memory_space<vmem>>, vector<2x128xf32>
    %3 = arith.addf %1, %2 : vector<2x128xf32>
    %c0_4 = arith.constant 0 : index
    %c0_5 = arith.constant 0 : index
    %c0_6 = arith.constant 0 : index
    %4 = vector.load %arg4[%c0_4, %c0_5, %c0_6] : memref<1x2x128xf32, #tpu.memory_space<vmem>>, vector<1x2x128xf32>
    %5 = vector.shape_cast %4 : vector<1x2x128xf32> to vector<2x128xf32>
    %6 = vector.shape_cast %3 : vector<2x128xf32> to vector<1x2x128xf32>
    tpu.vector_store %arg4[%c0_4, %c0_5, %c0_6], %6 {strides = array<i32>} : memref<1x2x128xf32, #tpu.memory_space<vmem>>, vector<1x2x128xf32>,
    return
  }
  func.func @transform_0(%arg0: i32, %arg1: i32) -> (i32, i32, i32) {
    %c0_i32 = arith.constant 0 : i32
    %c0_i32_0 = arith.constant 0 : i32
    return %arg1, %arg0, %c0_i32 : i32, i32, i32
  }
  func.func @transform_1(%arg0: i32, %arg1: i32) -> (i32, i32) {
    %c0_i32 = arith.constant 0 : i32
    %c0_i32_0 = arith.constant 0 : i32
    %c0_i32_1 = arith.constant 0 : i32
    return %c0_i32, %c0_i32_0 : i32, i32
  }
  func.func @transform_2(%arg0: i32, %arg1: i32) -> (i32, i32, i32) {
    %c0_i32 = arith.constant 0 : i32
    %c0_i32_0 = arith.constant 0 : i32
    return %arg1, %arg0, %c0_i32 : i32, i32, i32
  }
}

</mosaic_0001>

<llo_original>
// kernel: _positional_add.1
$region0: #{_positional_add.1}
  #allocation0 [shape = 'u32[]', space=smem, size = 0x4, offset = 0x4, fixed_abs, tag = 'smem constant byte address 0x4 - core index']
  #allocation1 [shape = 'u32[144,128]{1,0:T(1,128)}', space=vmem, size = 0x12000, scoped, tag = 'internal scratch']
  %s0 = inlined_call_operand.vmem [shape: f32[2,2,128], index: 0, kind: input, shape index: {}]
  %s1 = inlined_call_operand.vmem [shape: f32[2,128], index: 1, kind: input, shape index: {}]
  %s2 = inlined_call_operand.vmem [shape: f32[2,2,128], index: 2, kind: output, shape index: {}]
  %s3 = sld [smem:[#allocation0]]
  $region41: #{_positional_add.1} parent=0
    _
  %s5 = ssub.s32 1, %s3
  %s6 = scalar_select 0, %s5, %s3
  loop: start=0, step=1, limit=4
  $region2: #{_positional_add.1} parent=0 // loop_pre_header
    _
  $region3: #{_positional_add.1} parent=0 // loop_header
    %s8 = sphi 0, %s12
    %p9 = scmp.ge.s32.totalorder %s8, 4
    %s15 = sphi 0, %s27
    %s16 = sphi 0, %s23
    %s17 = sphi 0, %s15
    %s18 = sphi 0, %s16
    %s19 = sphi 0, %s17
    %s20 = sphi 0, %s18
    %s32 = sphi 0, %s34
    %s35 = sphi 0, %s32
    %s36 = sphi 0, %s35
    %s52 = sphi 0, %s36
    %s56 = sphi 0, %s56
    %s58 = sphi 0, %s56
    %s59 = sphi 0, %s58
    %s73 = sphi 0, %s59
    %s81 = sphi 0, %s83
    %s84 = sphi 0, %s81
    %s85 = sphi 0, %s84
    %s101 = sphi 0, %s85
  $region4: #{_positional_add.1} parent=0 // loop_header_branch
    %11 = sbr.rel (%p9) target = $region8
  $region5: #{_positional_add.1} parent=0 // loop_body
    %s13 = ssub.s32 %s8, 1
    %s14 = ssub.s32 %s8, 2
    %s21 = sadd.s32 1, %s16
    %p22 = scmp.ge.s32.totalorder %s21, 2
    %s23 = scalar_select %p22, 0, %s21
    %s24 = sadd.s32 1, %s15
    %s25 = scalar_select %p22, %s24, %s15
    %p26 = scmp.ge.s32.totalorder %s25, 1
    %s27 = scalar_select %p26, 0, %s25
    %s28 = ssub.s32 %s16, %s23
    %s29 = ssub.s32 %s15, %s27
    %s30 = sor.u32 %s28, %s29
    %p31 = scmp.eq.s32.totalorder %s30, 0
    %s33 = sadd.s32 %s32, 1
    %s34 = scalar_select %p31, %s32, %s33
    %p37 = pneg %p31
    %p38 = scmp.eq.s32.totalorder %s8, 1
    %p39 = por %p37, %p38
    %p40 = scmp.ne.s32.totalorder %s32, %s35
    %p41 = scmp.eq.s32.totalorder %s8, 0
    %p42 = por %p40, %p41
    %p43 = scmp.ne.s32.totalorder %s32, %s35
    %p44 = scmp.eq.s32.totalorder %s13, 1
    %p45 = por %p43, %p44
    %p46 = scmp.ne.s32.totalorder %s35, %s36
    %p47 = scmp.eq.s32.totalorder %s13, 0
    %p48 = por %p46, %p47
    %p49 = scmp.ne.s32.totalorder %s35, %s36
    %p50 = scmp.eq.s32.totalorder %s14, 1
    %p51 = por %p49, %p50
    %p53 = scmp.ne.s32.totalorder %s36, %s52
    %p54 = scmp.eq.s32.totalorder %s14, 0
    %p55 = por %p53, %p54
    %s57 = sadd.s32 %s56, 1
    %p60 = scmp.eq.s32.totalorder %s8, 1
    %p61 = scmp.ne.s32.totalorder %s56, %s58
    %p62 = scmp.eq.s32.totalorder %s8, 0
    %p63 = por %p61, %p62
    %p64 = scmp.ne.s32.totalorder %s56, %s58
    %p65 = scmp.eq.s32.totalorder %s13, 1
    %p66 = por %p64, %p65
    %p67 = scmp.ne.s32.totalorder %s58, %s59
    %p68 = scmp.eq.s32.totalorder %s13, 0
    %p69 = por %p67, %p68
    %p70 = scmp.ne.s32.totalorder %s58, %s59
    %p71 = scmp.eq.s32.totalorder %s14, 1
    %p72 = por %p70, %p71
    %p74 = scmp.ne.s32.totalorder %s59, %s73
    %p75 = scmp.eq.s32.totalorder %s14, 0
    %p76 = por %p74, %p75
    %s77 = ssub.s32 %s16, %s23
    %s78 = ssub.s32 %s15, %s27
    %s79 = sor.u32 %s77, %s78
    %p80 = scmp.eq.s32.totalorder %s79, 0
    %s82 = sadd.s32 %s81, 1
    %s83 = scalar_select %p80, %s81, %s82
    %p86 = pneg %p80
    %p87 = scmp.eq.s32.totalorder %s8, 1
    %p88 = por %p86, %p87
    %p89 = scmp.ne.s32.totalorder %s81, %s84
    %p90 = scmp.eq.s32.totalorder %s8, 0
    %p91 = por %p89, %p90
    %p92 = scmp.ne.s32.totalorder %s81, %s84
    %p93 = scmp.eq.s32.totalorder %s13, 1
    %p94 = por %p92, %p93
    %p95 = scmp.ne.s32.totalorder %s84, %s85
    %p96 = scmp.eq.s32.totalorder %s13, 0
    %p97 = por %p95, %p96
    %p98 = scmp.ne.s32.totalorder %s84, %s85
    %p99 = scmp.eq.s32.totalorder %s14, 1
    %p100 = por %p98, %p99
    %p102 = scmp.ne.s32.totalorder %s85, %s101
    %p103 = scmp.eq.s32.totalorder %s14, 0
    %p104 = por %p102, %p103
    %p105 = scmp.le.s32.totalorder 1, %s8
    %p106 = scmp.lt.s32.totalorder %s8, 3
    %p107 = pnand %p105, %p106
    %p108 = pneg %p107
    // Predicated region
    $region9: #{_positional_add.1} parent=5 // pred_check
      _
    $region10: #{_positional_add.1} parent=5 // pred_check_branch
      %110 = sbr.rel (%p107) target = $region12
    $region11: #{_positional_add.1} parent=5 // pred_region
      %s111 = ssub.s32 %s8, 1
      // Predicated region
      $region13: #{_positional_add.1} parent=11 // pred_check
        %p112 = pneg %p69
      $region14: #{_positional_add.1} parent=11 // pred_check_branch
        %114 = sbr.rel (%p112) target = $region16
      $region15: #{_positional_add.1} parent=11 // pred_region
        _
      $region16: #{_positional_add.1} parent=11 // pred_fallthru
        _
    $region12: #{_positional_add.1} parent=5 // pred_fallthru
      _
    %p115 = scmp.lt.s32.totalorder %s8, 2
    // Predicated region
    $region17: #{_positional_add.1} parent=5 // pred_check
      %p116 = pneg %p115
    $region18: #{_positional_add.1} parent=5 // pred_check_branch
      %118 = sbr.rel (%p116) target = $region20
    $region19: #{_positional_add.1} parent=5 // pred_region
      // Predicated region
      $region21: #{_positional_add.1} parent=19 // pred_check
        %p119 = pneg %p42
      $region22: #{_positional_add.1} parent=19 // pred_check_branch
        %121 = sbr.rel (%p119) target = $region24
      $region23: #{_positional_add.1} parent=19 // pred_region
        %p122 = scmp.lt.s32.totalorder %s16, 1
        %s123 = scalar_select %p122, %s16, 1
        %p124 = scmp.lt.s32.totalorder %s15, 0
        %s125 = scalar_select %p124, %s15, 0
        %s126 = sadd.s32 %s125, %s123
        %s127 = smul.addr %s126, 2
        %s128 = scalar_lea.vmem %s0, %s127
      $region24: #{_positional_add.1} parent=19 // pred_fallthru
        _
    $region20: #{_positional_add.1} parent=5 // pred_fallthru
      _
    %p129 = scmp.le.s32.totalorder 1, %s8
    %p130 = scmp.lt.s32.totalorder %s8, 3
    %p131 = pnand %p129, %p130
    %p132 = pneg %p131
    // Predicated region
    $region25: #{_positional_add.1} parent=5 // pred_check
      _
    $region26: #{_positional_add.1} parent=5 // pred_check_branch
      %134 = sbr.rel (%p131) target = $region28
    $region27: #{_positional_add.1} parent=5 // pred_region
      %s135 = ssub.s32 %s8, 1
      %p136 = scmp.lt.s32.totalorder %s18, 1
      %s137 = scalar_select %p136, %s18, 1
      %p138 = scmp.lt.s32.totalorder %s17, 0
      %s139 = scalar_select %p138, %s17, 0
      %s140 = sadd.s32 %s139, %s137
      %s141 = smul.addr %s140, 2
      %s142 = scalar_lea.vmem %s0, %s141
      %p143 = pneg %p48
      %p144 = pneg %p45
      %p145 = pneg %p69
      %p146 = pneg %p66
      %p147 = pneg %p97
      %p148 = pneg %p94
      %p149 = scmp.lt.s32.totalorder %s18, 1
      %s150 = scalar_select %p149, %s18, 1
      %p151 = scmp.lt.s32.totalorder %s17, 0
      %s152 = scalar_select %p151, %s17, 0
      %s153 = sadd.s32 %s152, %s150
      %s154 = smul.addr %s153, 2
      %s155 = scalar_lea.vmem %s2, %s154
      %p156 = scmp.lt.s32.totalorder %s18, 1
      %s157 = scalar_select %p156, %s18, 1
      %p158 = scmp.lt.s32.totalorder %s17, 0
      %s159 = scalar_select %p158, %s17, 0
      %s160 = sadd.s32 %s159, %s157
      %s161 = smul.addr %s160, 2
      %s162 = scalar_lea.vmem %s0, %s161
      %p163 = scmp.lt.s32.totalorder %s18, 1
      %s164 = scalar_select %p163, %s18, 1
      %p165 = scmp.lt.s32.totalorder %s17, 0
      %s166 = scalar_select %p165, %s17, 0
      %s167 = sadd.s32 %s166, %s164
      %s168 = smul.addr %s167, 2
      %s169 = scalar_lea.vmem %s2, %s168
      %v170 = vld [vmem:[%s162] sm:$0x3]
      %v171 = vld [vmem:[%s1] sm:$0x3]
      %v172 = vadd.f32 %v170, %v171
      %173 = vst [vmem:[%s169] sm:$0x3] %v172
      %p174 = scmp.lt.s32.totalorder %s18, 1
      %s175 = scalar_select %p174, %s18, 1
      %p176 = scmp.lt.s32.totalorder %s17, 0
      %s177 = scalar_select %p176, %s17, 0
      %s178 = sadd.s32 %s177, %s175
      %s179 = smul.addr %s178, 2
      %s180 = scalar_lea.vmem %s2, %s179
      // Predicated region
      $region29: #{_positional_add.1} parent=27 // pred_check
        %p181 = pneg %p94
      $region30: #{_positional_add.1} parent=27 // pred_check_branch
        %183 = sbr.rel (%p181) target = $region32
      $region31: #{_positional_add.1} parent=27 // pred_region
        _
      $region32: #{_positional_add.1} parent=27 // pred_fallthru
        _
    $region28: #{_positional_add.1} parent=5 // pred_fallthru
      _
    %p184 = scmp.le.s32.totalorder 2, %s8
    // Predicated region
    $region33: #{_positional_add.1} parent=5 // pred_check
      %p185 = pneg %p184
    $region34: #{_positional_add.1} parent=5 // pred_check_branch
      %187 = sbr.rel (%p185) target = $region36
    $region35: #{_positional_add.1} parent=5 // pred_region
      %s188 = ssub.s32 %s8, 2
      // Predicated region
      $region37: #{_positional_add.1} parent=35 // pred_check
        %p189 = pneg %p100
      $region38: #{_positional_add.1} parent=35 // pred_check_branch
        %191 = sbr.rel (%p189) target = $region40
      $region39: #{_positional_add.1} parent=35 // pred_region
        %p192 = scmp.lt.s32.totalorder %s20, 1
        %s193 = scalar_select %p192, %s20, 1
        %p194 = scmp.lt.s32.totalorder %s19, 0
        %s195 = scalar_select %p194, %s19, 0
        %s196 = sadd.s32 %s195, %s193
        %s197 = smul.addr %s196, 2
        %s198 = scalar_lea.vmem %s2, %s197
      $region40: #{_positional_add.1} parent=35 // pred_fallthru
        _
    $region36: #{_positional_add.1} parent=5 // pred_fallthru
      _
  $region6: #{_positional_add.1} parent=0 // loop_footer
    %s12 = sadd.s32 1, %s8
  $region7: #{_positional_add.1} parent=0 // loop_footer_branch
    %7 = sbr.rel target = $region3
  $region8: #{_positional_add.1} parent=0 // loop_exit
    _

</llo_original>
